<compile_context>
chip_gen: v7x
topology: tpu7x:2x2x1
jax: 0.10.0
libtpu: 0.0.40
codegen_flags: <defaults>
</compile_context>

<pallas_src>
import functools

import jax
import jax.numpy as jnp
from jax.experimental import pallas as pl
from jax.experimental.pallas import tpu as pltpu

_EPS = 1e-5
_SLOPE = 0.2


# --------------------------------------------------------------------------------------
# Shared epilogue (f32 math): InstanceNorm2d(affine=False) + LeakyReLU(0.2)
# --------------------------------------------------------------------------------------
def _instance_norm_leaky_relu(y, *, normalize, eps, slope):
    # y: (Ct, P) f32.  Single-pass stats: var = E[y^2] - mean^2 (no diff temporary).
    if normalize:
        inv_p = 1.0 / y.shape[-1]
        mean = jnp.sum(y, axis=-1, keepdims=True) * inv_p
        mean_sq = jnp.sum(y * y, axis=-1, keepdims=True) * inv_p
        var = mean_sq - mean * mean
        y = (y - mean) * jax.lax.rsqrt(var + eps)
    return jnp.where(y >= 0, y, slope * y)


# --------------------------------------------------------------------------------------
# Kernels
# --------------------------------------------------------------------------------------
def _im2col_down_kernel(p_ref, w_ref, o_ref, *, normalize, eps, slope):
    # p_ref: (K, P) bf16 K-major im2col patches; w_ref: (Ct, K) bf16; o_ref: (Ct, P).
    y = jnp.dot(w_ref[...], p_ref[...], preferred_element_type=jnp.float32)
    o_ref[...] = _instance_norm_leaky_relu(
        y, normalize=normalize, eps=eps, slope=slope).astype(o_ref.dtype)


def _tap_down_kernel(planes_ref, w_ref, o_ref, acc_ref, *, OW, P,
                     normalize, eps, slope):
    # planes_ref: (8, Cin_t, (OH+1)*OW) bf16 pre-shifted stride-2 phase planes
    # w_ref:      (16, Ct, Cin_t)       bf16 per-tap weight tiles
    # o_ref:      (Ct, P)               output block, resident across the Cin axis
    # acc_ref:    (Ct, P)               f32 accumulator scratch
    c = pl.program_id(2)

    @pl.when(c == 0)
    def _init():
        acc_ref[...] = jnp.zeros_like(acc_ref)

    # In-kernel im2col: tap (kh, kw) of the k=4/s=2/p=1 conv reads padded pixel
    # (2*oh+kh, 2*ow+kw) = plane(ph, pw, qw)[oh+qh, ow], i.e. a contiguous lane-slice
    # starting at qh*OW of the flattened (OH+1, OW) plane.  16 MXU matmuls accumulate
    # directly into the f32 scratch -- no 4x patch stream in HBM.
    for kh in range(4):
        for kw in range(4):
            qh, ph = divmod(kh, 2)
            qw, pw = divmod(kw, 2)
            plane = (ph * 2 + pw) * 2 + qw
            x_tap = planes_ref[plane, :, pl.ds(qh * OW, P)]        # (Cin_t, P) bf16
            acc_ref[...] += jnp.dot(w_ref[kh * 4 + kw], x_tap,
                                    preferred_element_type=jnp.float32)

    @pl.when(c == pl.num_programs(2) - 1)
    def _finalize():
        o_ref[...] = _instance_norm_leaky_relu(
            acc_ref[...], normalize=normalize, eps=eps, slope=slope
        ).astype(o_ref.dtype)


# --------------------------------------------------------------------------------------
# Tiling helpers (generation-aware VMEM budget)
# --------------------------------------------------------------------------------------
def _vmem_budget():
    """Return (vmem_limit_bytes for the compiler, byte budget for tile planning)."""
    cap = None
    try:
        cap = getattr(pltpu.get_tpu_info(), "vmem_capacity_bytes", None)
    except Exception:
        cap = None
    if not cap:
        cap = 64 * 1024 * 1024          # conservative (v7x-sized) fallback
    limit = int(cap) * 3 // 4           # leave headroom for Mosaic-internal scratch
    return limit, limit * 9 // 10


def _divisor_candidates(dim, cands):
    out = [c for c in cands if c <= dim and dim % c == 0]
    if dim not in out:
        out = [dim] + out
    return out                           # descending, largest first


def _pick_tap_tiles(Cout, Cin, P, S, tile_budget, out_itemsize):
    ct_cands = _divisor_candidates(Cout, (512, 256, 128, 64, 32, 16, 8))
    # Cin tile must keep the weight block's last dim a multiple of 128 or the full Cin.
    cin_cands = [Cin] + [c for c in (512, 384, 256, 128) if c < Cin and Cin % c == 0]
    for ct in ct_cands:                  # biggest ct first: planes stream Cout/ct times
        for cint in cin_cands:           # full Cin first: fewer reduction steps
            need = (2 * 8 * cint * S * 2          # double-buffered bf16 phase planes
                    + 2 * 16 * ct * cint * 2      # double-buffered bf16 weight taps
                    + 2 * ct * P * out_itemsize   # double-buffered output block
                    + ct * P * 4)                 # resident f32 accumulator scratch
            if need <= tile_budget:
                return ct, cint
    return ct_cands[-1], cin_cands[-1]


def _pick_im2col_ct(Cout, K, P, tile_budget, out_itemsize):
    ct_cands = _divisor_candidates(Cout, (512, 256, 128, 64, 32, 16, 8))
    for ct in ct_cands:
        need = (2 * K * P * 2 + 2 * ct * K * 2
                + 2 * ct * P * out_itemsize + ct * P * 4)
        if need <= tile_budget:
            return ct
    return ct_cands[-1]


# --------------------------------------------------------------------------------------
# Wrappers
# --------------------------------------------------------------------------------------
def _unet_down_per_tap(x, weight, normalize, out_dtype):
    N, Cin, H, W = x.shape
    Cout = weight.shape[0]
    OH, OW = H // 2, W // 2
    P, S = OH * OW, (OH + 1) * OW
    vmem_limit, tile_budget = _vmem_budget()

    # Host prep: ~1x-byte (bf16) pre-shifted stride-2 phase planes.
    xp = jnp.pad(x.astype(jnp.bfloat16), ((0, 0), (0, 0), (1, 1), (1, 1)))
    planes = []
    for ph in range(2):
        for pw in range(2):
            phase = xp[:, :, ph::2, pw::2]                  # (N, Cin, OH+1, OW+1)
            for qw in range(2):
                planes.append(phase[:, :, :, qw:qw + OW])   # (N, Cin, OH+1, OW)
    planes = jnp.stack(planes, axis=1).reshape(N, 8, Cin, S)
    w_taps = jnp.transpose(weight, (2, 3, 0, 1)).reshape(16, Cout, Cin)
    w_taps = w_taps.astype(jnp.bfloat16)

    out_isz = jnp.dtype(out_dtype).itemsize
    ct, cint = _pick_tap_tiles(Cout, Cin, P, S, tile_budget, out_isz)
    grid = (N, Cout // ct, Cin // cint)

    kernel = functools.partial(_tap_down_kernel, OW=OW, P=P,
                               normalize=normalize, eps=_EPS, slope=_SLOPE)

    out = pl.pallas_call(
        kernel,
        out_shape=jax.ShapeDtypeStruct((N, Cout, P), out_dtype),
        grid_spec=pltpu.PrefetchScalarGridSpec(
            num_scalar_prefetch=0,
            grid=grid,
            in_specs=[
                pl.BlockSpec((pl.Squeezed(), 8, cint, S),
                             lambda n, j, c: (n, 0, c, 0)),
                pl.BlockSpec((16, ct, cint), lambda n, j, c: (0, j, c)),
            ],
            out_specs=pl.BlockSpec((pl.Squeezed(), ct, P),
                                   lambda n, j, c: (n, j, 0)),
            scratch_shapes=[pltpu.VMEM((ct, P), jnp.float32)],
        ),
        compiler_params=pltpu.CompilerParams(
            # N shards across cores; only split Cout across cores when the layer is
            # deep/small-P (compute-bound) or N >= 2 -- avoids doubling the plane
            # stream on a bandwidth-bound layer on 2-TC chips.
            dimension_semantics=(
                "parallel",
                "parallel" if (N >= 2 or P <= 1024) else "arbitrary",
                "arbitrary"),
            vmem_limit_bytes=vmem_limit,
        ),
    )(planes, w_taps)
    return out.reshape(N, Cout, OH, OW)       # free reshape: lane-dense NCHW result


def _unet_down_im2col(x, weight, normalize, out_dtype):
    N, Cin, H, W = x.shape
    Cout = weight.shape[0]
    KH = KW = 4
    OH, OW = H // 2, W // 2
    P = OH * OW
    K = Cin * KH * KW
    vmem_limit, tile_budget = _vmem_budget()

    # Full-K im2col (only used for tiny Cin, e.g. down1's Cin=3): K-major, bf16.
    xp = jnp.pad(x, ((0, 0), (0, 0), (1, 1), (1, 1))).astype(jnp.bfloat16)
    taps = [xp[:, :, kh:kh + 2 * OH:2, kw:kw + 2 * OW:2]
            for kh in range(KH) for kw in range(KW)]         # 16 x (N, Cin, OH, OW)
    pat = jnp.stack(taps, axis=2).reshape(N, K, P)           # (N, K, P)
    w2d = weight.reshape(Cout, K).astype(jnp.bfloat16)       # (Cout, K)

    out_isz = jnp.dtype(out_dtype).itemsize
    ct = _pick_im2col_ct(Cout, K, P, tile_budget, out_isz)
    grid = (N, Cout // ct)

    kernel = functools.partial(_im2col_down_kernel,
                               normalize=normalize, eps=_EPS, slope=_SLOPE)

    out = pl.pallas_call(
        kernel,
        out_shape=jax.ShapeDtypeStruct((N, Cout, P), out_dtype),
        grid_spec=pltpu.PrefetchScalarGridSpec(
            num_scalar_prefetch=0,
            grid=grid,
            in_specs=[
                pl.BlockSpec((pl.Squeezed(), K, P), lambda n, j: (n, 0, 0)),
                pl.BlockSpec((ct, K), lambda n, j: (j, 0)),
            ],
            out_specs=pl.BlockSpec((pl.Squeezed(), ct, P), lambda n, j: (n, j, 0)),
        ),
        compiler_params=pltpu.CompilerParams(
            dimension_semantics=(
                "parallel",
                "parallel" if (N >= 2 or P <= 1024) else "arbitrary"),
            vmem_limit_bytes=vmem_limit,
        ),
    )(pat, w2d)
    return out.reshape(N, Cout, OH, OW)


def unet_down(x, weight, *, normalize=True, out_dtype=jnp.bfloat16):
    """UNetDown forward.  x: (N, Cin, H, W) f32, weight: (Cout, Cin, 4, 4) f32.
    Returns (N, Cout, H//2, W//2) in `out_dtype` (bf16 default: the next UNetDown
    re-quantizes its input to bf16 anyway)."""
    N, Cin, H, W = x.shape
    Cout, Cin_w, KH, KW = weight.shape
    assert (Cin_w, KH, KW) == (Cin, 4, 4)
    assert H % 2 == 0 and W % 2 == 0, "UNetDown assumes even spatial dims"
    if Cin >= 16:
        return _unet_down_per_tap(x, weight, normalize, out_dtype)
    # Tiny Cin (down1, Cin=3): a per-tap contraction of 3 would starve the MXU.
    return _unet_down_im2col(x, weight, normalize, out_dtype)


# --------------------------------------------------------------------------------------
# Reference & test
# --------------------------------------------------------------------------------------
def unet_down_reference(x, weight, normalize=True):
    y = jax.lax.conv_general_dilated(
        x, weight, window_strides=(2, 2), padding=((1, 1), (1, 1)),
        dimension_numbers=("NCHW", "OIHW", "NCHW"))
    if normalize:
        mean = jnp.mean(y, axis=(2, 3), keepdims=True)
        var = jnp.mean((y - mean) ** 2, axis=(2, 3), keepdims=True)
        y = (y - mean) * jax.lax.rsqrt(var + _EPS)
    return jnp.where(y >= 0, y, _SLOPE * y)


def _quantize_bf16(a):
    # The kernel feeds the MXU bf16 operands; quantize the reference inputs identically
    # so the comparison isolates accumulation order / bf16 output rounding only.
    return a.astype(jnp.bfloat16).astype(jnp.float32)


if __name__ == "__main__":
    key = jax.random.PRNGKey(0)
    k_x, k_w, k_x2, k_w2 = jax.random.split(key, 4)

    # Case 1: small-Cin block (down1-like) -> full-K im2col path.
    N, Cin, H, W, Cout = 2, 4, 16, 16, 8
    x = jax.random.normal(k_x, (N, Cin, H, W), dtype=jnp.float32)
    w = 0.1 * jax.random.normal(k_w, (Cout, Cin, 4, 4), dtype=jnp.float32)

    out = jax.block_until_ready(unet_down(x, w))
    assert out.shape == (N, Cout, H // 2, W // 2)
    ref = unet_down_reference(_quantize_bf16(x), _quantize_bf16(w))
    assert jnp.allclose(out.astype(jnp.float32), ref, atol=2e-2, rtol=2e-2)

    # normalize=False variant (down1 / down5 use normalize=False).
    out_nn = jax.block_until_ready(unet_down(x, w, normalize=False))
    ref_nn = unet_down_reference(_quantize_bf16(x), _quantize_bf16(w), normalize=False)
    assert jnp.allclose(out_nn.astype(jnp.float32), ref_nn, atol=2e-2, rtol=2e-2)

    # Case 2: Cin=64 -> in-kernel per-tap im2col path (16 per-tap MXU matmuls over
    # pre-shifted stride-2 phase planes) with the (trivial) Cin reduction axis.
    N2, Cin2, H2, W2, Cout2 = 1, 64, 16, 16, 32
    x2 = jax.random.normal(k_x2, (N2, Cin2, H2, W2), dtype=jnp.float32)
    w2 = 0.05 * jax.random.normal(k_w2, (Cout2, Cin2, 4, 4), dtype=jnp.float32)

    out2 = jax.block_until_ready(unet_down(x2, w2))
    assert out2.shape == (N2, Cout2, H2 // 2, W2 // 2)
    ref2 = unet_down_reference(_quantize_bf16(x2), _quantize_bf16(w2))
    assert jnp.allclose(out2.astype(jnp.float32), ref2, atol=2e-2, rtol=2e-2)

    print("KERNEL_OK")
</pallas_src>

<mosaic_0001>
module attributes {stable_mosaic.version = 11 : i64} {
  func.func @_im2col_down_kernel(%arg0: i32, %arg1: i32, %arg2: memref<1x64x64xbf16, #tpu.memory_space<vmem>>, %arg3: memref<8x64xbf16, #tpu.memory_space<vmem>>, %arg4: memref<1x8x64xbf16, #tpu.memory_space<vmem>>) attributes {dimension_semantics = [#tpu.dimension_semantics<parallel>, #tpu.dimension_semantics<parallel>], iteration_bounds = array<i64: 2, 1>, scalar_prefetch = 0 : i64, scratch_operands = 0 : i64, tpu.core_type = #tpu.core_type<tc>, window_params = [{transform_indices = @transform_0, window_bounds = array<i64: 1, 64, 64>}, {transform_indices = @transform_1, window_bounds = array<i64: 8, 64>}, {transform_indices = @transform_2, window_bounds = array<i64: 1, 8, 64>}]} {
    %c0 = arith.constant 0 : index
    %c0_0 = arith.constant 0 : index
    %0 = vector.load %arg3[%c0, %c0_0] : memref<8x64xbf16, #tpu.memory_space<vmem>>, vector<8x64xbf16>
    %c0_1 = arith.constant 0 : index
    %c0_2 = arith.constant 0 : index
    %c0_3 = arith.constant 0 : index
    %1 = vector.load %arg2[%c0_1, %c0_2, %c0_3] : memref<1x64x64xbf16, #tpu.memory_space<vmem>>, vector<1x64x64xbf16>
    %2 = vector.shape_cast %1 : vector<1x64x64xbf16> to vector<64x64xbf16>
    %cst = arith.constant dense<0.000000e+00> : vector<8x64xf32>
    %3 = tpu.matmul %0, %2, %cst {dimension_numbers = #tpu.dot_dimension_numbers<[1], [0], [0], [1], [0, 0, 1, 1], [], []>} : vector<8x64xbf16>, vector<64x64xbf16>, vector<8x64xf32> -> vector<8x64xf32>
    %cst_4 = arith.constant dense<0.000000e+00> : vector<8xf32>
    %4 = vector.multi_reduction <add>, %3, %cst_4 [1] : vector<8x64xf32> to vector<8xf32>
    %5 = vector.shape_cast %4 : vector<8xf32> to vector<8x1xf32>
    %cst_5 = arith.constant 1.562500e-02 : f32
    %6 = vector.broadcast %cst_5 : f32 to vector<8x1xf32>
    %7 = arith.mulf %5, %6 : vector<8x1xf32>
    %8 = arith.mulf %3, %3 : vector<8x64xf32>
    %cst_6 = arith.constant dense<0.000000e+00> : vector<8xf32>
    %9 = vector.multi_reduction <add>, %8, %cst_6 [1] : vector<8x64xf32> to vector<8xf32>
    %10 = vector.shape_cast %9 : vector<8xf32> to vector<8x1xf32>
    %cst_7 = arith.constant 1.562500e-02 : f32
    %11 = vector.broadcast %cst_7 : f32 to vector<8x1xf32>
    %12 = arith.mulf %10, %11 : vector<8x1xf32>
    %13 = arith.mulf %7, %7 : vector<8x1xf32>
    %14 = arith.subf %12, %13 : vector<8x1xf32>
    %15 = vector.broadcast %7 : vector<8x1xf32> to vector<8x64xf32>
    %16 = arith.subf %3, %15 : vector<8x64xf32>
    %cst_8 = arith.constant 9.99999974E-6 : f32
    %17 = vector.broadcast %cst_8 : f32 to vector<8x1xf32>
    %18 = arith.addf %14, %17 : vector<8x1xf32>
    %19 = math.rsqrt %18 : vector<8x1xf32>
    %20 = vector.broadcast %19 : vector<8x1xf32> to vector<8x64xf32>
    %21 = arith.mulf %16, %20 : vector<8x64xf32>
    %cst_9 = arith.constant 0.000000e+00 : f32
    %22 = vector.broadcast %cst_9 : f32 to vector<8x64xf32>
    %23 = arith.cmpf oge, %21, %22 : vector<8x64xf32>
    %cst_10 = arith.constant 2.000000e-01 : f32
    %24 = vector.broadcast %cst_10 : f32 to vector<8x64xf32>
    %25 = arith.mulf %24, %21 : vector<8x64xf32>
    %26 = arith.select %23, %21, %25 : vector<8x64xi1>, vector<8x64xf32>
    %27 = arith.truncf %26 : vector<8x64xf32> to vector<8x64xbf16>
    %c0_11 = arith.constant 0 : index
    %c0_12 = arith.constant 0 : index
    %c0_13 = arith.constant 0 : index
    %28 = vector.load %arg4[%c0_11, %c0_12, %c0_13] : memref<1x8x64xbf16, #tpu.memory_space<vmem>>, vector<1x8x64xbf16>
    %29 = vector.shape_cast %28 : vector<1x8x64xbf16> to vector<8x64xbf16>
    %30 = vector.shape_cast %27 : vector<8x64xbf16> to vector<1x8x64xbf16>
    tpu.vector_store %arg4[%c0_11, %c0_12, %c0_13], %30 {strides = array<i32>} : memref<1x8x64xbf16, #tpu.memory_space<vmem>>, vector<1x8x64xbf16>,
    return
  }
  func.func @transform_0(%arg0: i32, %arg1: i32) -> (i32, i32, i32) {
    %c0_i32 = arith.constant 0 : i32
    %c0_i32_0 = arith.constant 0 : i32
    %c0_i32_1 = arith.constant 0 : i32
    return %arg0, %c0_i32, %c0_i32_0 : i32, i32, i32
  }
  func.func @transform_1(%arg0: i32, %arg1: i32) -> (i32, i32) {
    %c0_i32 = arith.constant 0 : i32
    %c0_i32_0 = arith.constant 0 : i32
    return %arg1, %c0_i32 : i32, i32
  }
  func.func @transform_2(%arg0: i32, %arg1: i32) -> (i32, i32, i32) {
    %c0_i32 = arith.constant 0 : i32
    %c0_i32_0 = arith.constant 0 : i32
    return %arg0, %arg1, %c0_i32 : i32, i32, i32
  }
}

</mosaic_0001>

<llo_original>
// kernel: tpu_custom_call.1
$region0: #{tpu_custom_call.1}
  #allocation0 [shape = 'u32[]', space=smem, size = 0x4, offset = 0x4, fixed_abs, tag = 'smem constant byte address 0x4 - core index']
  #allocation1 [shape = 'u32[144,128]{1,0:T(1,128)}', space=vmem, size = 0x12000, scoped, tag = 'internal scratch']
  %s0 = inlined_call_operand.hbm [shape: bf16[2,64,64], index: 0, kind: input, shape index: {}]
  %s1 = inlined_call_operand.hbm [shape: bf16[8,64], index: 1, kind: input, shape index: {}]
  %s2 = inlined_call_operand.hbm [shape: bf16[2,8,64], index: 2, kind: output, shape index: {}]
  %s3 = sld [smem:[#allocation0]]
  $region49: #{tpu_custom_call.1} parent=0
    _
  %s5 = ssub.s32 1, %s3
  %s6 = scalar_select 0, %s5, %s3
  $region1: #{tpu_custom_call.1} parent=0
    #allocation2 [shape = 'u8[32768]{0}', space=vmem, size = 0x8000, scoped, tag = 'input window, operand 0']
    #allocation3 [shape = 's32[2]{0}', space=sflag, size = 0x8, scoped, tag = 'scoped memory for tpu_custom_call.1']
    #allocation4 [shape = 's32[2]{0}', space=sflag, size = 0x8, scoped, tag = 'scoped memory for tpu_custom_call.1']
    #allocation5 [shape = 'u8[2048]{0}', space=vmem, size = 0x800, scoped, tag = 'input window, operand 1, single buffered']
    #allocation6 [shape = 's32[1]{0}', space=sflag, size = 0x4, scoped, tag = 'scoped memory for tpu_custom_call.1']
    #allocation7 [shape = 'u8[4096]{0}', space=vmem, size = 0x1000, scoped, tag = 'output window, operand 0']
    %7 = vsyncpa [#allocation3], 0
    %s8 = scalar_lea.sflag [#allocation3], 1
    %9 = vsyncpa %s8, 0
    %10 = vsyncpa [#allocation6], 0
    %11 = vsyncpa [#allocation4], 0
    %s12 = scalar_lea.sflag [#allocation4], 1
    %13 = vsyncpa %s12, 0
    loop: start=0, step=1, limit=4
    $region2: #{tpu_custom_call.1} parent=1 // loop_pre_header
      _
    $region3: #{tpu_custom_call.1} parent=1 // loop_header
      %s15 = sphi 0, %s19
      %p16 = scmp.ge.s32.totalorder %s15, 4
      %s22 = sphi 0, %s34
      %s23 = sphi 0, %s30
      %s24 = sphi 0, %s22
      %s25 = sphi 0, %s23
      %s26 = sphi 0, %s24
      %s27 = sphi 0, %s25
      %s37 = sphi 0, %s39
      %s40 = sphi 0, %s37
      %s41 = sphi 0, %s40
      %s57 = sphi 0, %s41
      %s63 = sphi 0, %s65
      %s66 = sphi 0, %s63
      %s67 = sphi 0, %s66
      %s83 = sphi 0, %s67
      %s91 = sphi 0, %s93
      %s94 = sphi 0, %s91
      %s95 = sphi 0, %s94
      %s111 = sphi 0, %s95
    $region4: #{tpu_custom_call.1} parent=1 // loop_header_branch
      %18 = sbr.rel (%p16) target = $region8
    $region5: #{tpu_custom_call.1} parent=1 // loop_body
      %s20 = ssub.s32 %s15, 1
      %s21 = ssub.s32 %s15, 2
      %s28 = sadd.s32 1, %s23
      %p29 = scmp.ge.s32.totalorder %s28, 1
      %s30 = scalar_select %p29, 0, %s28
      %s31 = sadd.s32 1, %s22
      %s32 = scalar_select %p29, %s31, %s22
      %p33 = scmp.ge.s32.totalorder %s32, 2
      %s34 = scalar_select %p33, 0, %s32
      %s35 = ssub.s32 %s22, %s34
      %p36 = scmp.eq.s32.totalorder %s35, 0
      %s38 = sadd.s32 %s37, 1
      %s39 = scalar_select %p36, %s37, %s38
      %p42 = pneg %p36
      %p43 = scmp.eq.s32.totalorder %s15, 1
      %p44 = por %p42, %p43
      %p45 = scmp.ne.s32.totalorder %s37, %s40
      %p46 = scmp.eq.s32.totalorder %s15, 0
      %p47 = por %p45, %p46
      %p48 = scmp.ne.s32.totalorder %s37, %s40
      %p49 = scmp.eq.s32.totalorder %s20, 1
      %p50 = por %p48, %p49
      %p51 = scmp.ne.s32.totalorder %s40, %s41
      %p52 = scmp.eq.s32.totalorder %s20, 0
      %p53 = por %p51, %p52
      %p54 = scmp.ne.s32.totalorder %s40, %s41
      %p55 = scmp.eq.s32.totalorder %s21, 1
      %p56 = por %p54, %p55
      %p58 = scmp.ne.s32.totalorder %s41, %s57
      %p59 = scmp.eq.s32.totalorder %s21, 0
      %p60 = por %p58, %p59
      %s61 = ssub.s32 %s23, %s30
      %p62 = scmp.eq.s32.totalorder %s61, 0
      %s64 = sadd.s32 %s63, 1
      %s65 = scalar_select %p62, %s63, %s64
      %p68 = pneg %p62
      %p69 = scmp.eq.s32.totalorder %s15, 1
      %p70 = por %p68, %p69
      %p71 = scmp.ne.s32.totalorder %s63, %s66
      %p72 = scmp.eq.s32.totalorder %s15, 0
      %p73 = por %p71, %p72
      %p74 = scmp.ne.s32.totalorder %s63, %s66
      %p75 = scmp.eq.s32.totalorder %s20, 1
      %p76 = por %p74, %p75
      %p77 = scmp.ne.s32.totalorder %s66, %s67
      %p78 = scmp.eq.s32.totalorder %s20, 0
      %p79 = por %p77, %p78
      %p80 = scmp.ne.s32.totalorder %s66, %s67
      %p81 = scmp.eq.s32.totalorder %s21, 1
      %p82 = por %p80, %p81
      %p84 = scmp.ne.s32.totalorder %s67, %s83
      %p85 = scmp.eq.s32.totalorder %s21, 0
      %p86 = por %p84, %p85
      %s87 = ssub.s32 %s22, %s34
      %s88 = ssub.s32 %s23, %s30
      %s89 = sor.u32 %s87, %s88
      %p90 = scmp.eq.s32.totalorder %s89, 0
      %s92 = sadd.s32 %s91, 1
      %s93 = scalar_select %p90, %s91, %s92
      %p96 = pneg %p90
      %p97 = scmp.eq.s32.totalorder %s15, 1
      %p98 = por %p96, %p97
      %p99 = scmp.ne.s32.totalorder %s91, %s94
      %p100 = scmp.eq.s32.totalorder %s15, 0
      %p101 = por %p99, %p100
      %p102 = scmp.ne.s32.totalorder %s91, %s94
      %p103 = scmp.eq.s32.totalorder %s20, 1
      %p104 = por %p102, %p103
      %p105 = scmp.ne.s32.totalorder %s94, %s95
      %p106 = scmp.eq.s32.totalorder %s20, 0
      %p107 = por %p105, %p106
      %p108 = scmp.ne.s32.totalorder %s94, %s95
      %p109 = scmp.eq.s32.totalorder %s21, 1
      %p110 = por %p108, %p109
      %p112 = scmp.ne.s32.totalorder %s95, %s111
      %p113 = scmp.eq.s32.totalorder %s21, 0
      %p114 = por %p112, %p113
      %p115 = scmp.le.s32.totalorder 1, %s15
      %p116 = scmp.lt.s32.totalorder %s15, 3
      %p117 = pnand %p115, %p116
      %p118 = pneg %p117
      // Predicated region
      $region9: #{tpu_custom_call.1} parent=5 // pred_check
        _
      $region10: #{tpu_custom_call.1} parent=5 // pred_check_branch
        %120 = sbr.rel (%p117) target = $region12
      $region11: #{tpu_custom_call.1} parent=5 // pred_region
        %s121 = ssub.s32 %s15, 1
        // Predicated region
        $region13: #{tpu_custom_call.1} parent=11 // pred_check
          %p122 = pneg %p79
        $region14: #{tpu_custom_call.1} parent=11 // pred_check_branch
          %124 = sbr.rel (%p122) target = $region16
        $region15: #{tpu_custom_call.1} parent=11 // pred_region
          %s126 = ssub.s32 64, 64
          %127 = vsyncadd [#allocation6], %s126
          %s128 = smul.addr %s25, 64
          %s129 = scalar_lea.hbm %s1, %s128
          %s131 = sshll.u32 [#allocation5], 4
          %s132 = int_to_ptr.vmem [resolvable:$true] %s131
          %134 = dma.hbm_to_vmem [thread:$0]  %s129, 64, %s132, [#allocation6]
        $region16: #{tpu_custom_call.1} parent=11 // pred_fallthru
          _
      $region12: #{tpu_custom_call.1} parent=5 // pred_fallthru
        _
      %p135 = scmp.lt.s32.totalorder %s15, 2
      // Predicated region
      $region17: #{tpu_custom_call.1} parent=5 // pred_check
        %p136 = pneg %p135
      $region18: #{tpu_custom_call.1} parent=5 // pred_check_branch
        %138 = sbr.rel (%p136) target = $region20
      $region19: #{tpu_custom_call.1} parent=5 // pred_region
        // Predicated region
        $region21: #{tpu_custom_call.1} parent=19 // pred_check
          %p139 = pneg %p47
        $region22: #{tpu_custom_call.1} parent=19 // pred_check_branch
          %141 = sbr.rel (%p139) target = $region24
        $region23: #{tpu_custom_call.1} parent=19 // pred_region
          %s142 = sand.u32 %s37, 1
          %s143 = scalar_lea.sflag [#allocation3], %s142
          %s144 = sand.u32 %s37, 1
          %s145 = smul.addr %s144, 32
          %s146 = scalar_lea.vmem [#allocation2], %s145
          %s148 = ssub.s32 512, 512
          %149 = vsyncadd %s143, %s148
          %s150 = smul.addr %s22, 8
          %s151 = smul.addr %s150, 64
          %s152 = scalar_lea.hbm %s0, %s151
          %s153 = sshll.u32 %s146, 4
          %s154 = int_to_ptr.vmem [resolvable:$true] %s153
          %159 = dma.hbm_to_vmem [thread:$0]  %s152, 512, %s154, %s143, 64, 64, 4
        $region24: #{tpu_custom_call.1} parent=19 // pred_fallthru
          _
      $region20: #{tpu_custom_call.1} parent=5 // pred_fallthru
        _
      %p160 = scmp.le.s32.totalorder 1, %s15
      %p161 = scmp.lt.s32.totalorder %s15, 3
      %p162 = pnand %p160, %p161
      %p163 = pneg %p162
      // Predicated region
      $region25: #{tpu_custom_call.1} parent=5 // pred_check
        _
      $region26: #{tpu_custom_call.1} parent=5 // pred_check_branch
        %165 = sbr.rel (%p162) target = $region28
      $region27: #{tpu_custom_call.1} parent=5 // pred_region
        %s166 = ssub.s32 %s15, 1
        %s167 = sand.u32 %s40, 1
        %s168 = scalar_lea.sflag [#allocation3], %s167
        %s169 = sand.u32 %s40, 1
        %s170 = smul.addr %s169, 32
        %s171 = scalar_lea.vmem [#allocation2], %s170
        // Predicated region
        $region29: #{tpu_custom_call.1} parent=27 // pred_check
          %p172 = pneg %p53
        $region30: #{tpu_custom_call.1} parent=27 // pred_check_branch
          %174 = sbr.rel (%p172) target = $region32
        $region31: #{tpu_custom_call.1} parent=27 // pred_region
          %175 = dma.done %s168, 512
        $region32: #{tpu_custom_call.1} parent=27 // pred_fallthru
          _
        // Predicated region
        $region33: #{tpu_custom_call.1} parent=27 // pred_check
          %p176 = pneg %p79
        $region34: #{tpu_custom_call.1} parent=27 // pred_check_branch
          %178 = sbr.rel (%p176) target = $region36
        $region35: #{tpu_custom_call.1} parent=27 // pred_region
          %179 = dma.done [#allocation6], 64
        $region36: #{tpu_custom_call.1} parent=27 // pred_fallthru
          _
        %s180 = sand.u32 %s40, 1
        %s181 = scalar_lea.sflag [#allocation3], %s180
        %s182 = sand.u32 %s40, 1
        %s183 = smul.addr %s182, 32
        %s184 = scalar_lea.vmem [#allocation2], %s183
        %p185 = pneg %p53
        %p186 = pneg %p50
        %p187 = pneg %p79
        %p188 = pneg %p76
        %p189 = pneg %p107
        %p190 = pneg %p104
        %s191 = sand.u32 %s94, 1
        %s192 = scalar_lea.sflag [#allocation4], %s191
        %s193 = sand.u32 %s94, 1
        %s194 = smul.addr %s193, 4
        %s195 = scalar_lea.vmem [#allocation7], %s194
        %v197 = vld [vmem:[#allocation5] sm:$0xf]
        %v198 = vld [vmem:[%s171] sm:$0xf]
        %v199 = vld [vmem:[%s171 + $0x4] sm:$0xf]
        %v200 = vld [vmem:[%s171 + $0x8] sm:$0xf]
        %v201 = vld [vmem:[%s171 + $0xc] sm:$0xf]
        %v202 = vld [vmem:[%s171 + $0x10] sm:$0xf]
        %v203 = vld [vmem:[%s171 + $0x14] sm:$0xf]
        %v204 = vld [vmem:[%s171 + $0x18] sm:$0xf]
        %v205 = vld [vmem:[%s171 + $0x1c] sm:$0xf]
        %v214 = vunpack.c.l.b16 %v198
        %v215 = vunpack.c.l.b16 %v199
        %v216 = vunpack.c.l.b16 %v200
        %v217 = vunpack.c.l.b16 %v201
        %v218 = vunpack.c.l.b16 %v202
        %v219 = vunpack.c.l.b16 %v203
        %v220 = vunpack.c.l.b16 %v204
        %v221 = vunpack.c.l.b16 %v205
        %v222 = vpack.c.b16 %v215, %v214
        %v223 = vpack.c.b16 %v217, %v216
        %v224 = vpack.c.b16 %v219, %v218
        %v225 = vpack.c.b16 %v221, %v220
        %vm230 = vcmask 523264
        %v232 = vsel %vm230, %v197, 0
        %234 = vmatprep.subr.bf16.mxu0 0
        %235 = vmatpush1.bf16.msra.mxu0 %v222
        %236 = vmatprep.subr.bf16.mxu0 0
        %237 = vmatpush1.bf16.msra.mxu0 %v223
        %238 = vmatprep.subr.bf16.mxu0 0
        %239 = vmatpush1.bf16.msra.mxu0 %v224
        %240 = vmatprep.subr.bf16.mxu0 0
        %241 = vmatpush1.bf16.msra.mxu0 %v225
        %242 = vmatprep.subr.bf16.mxu0 0
        %243 = vmatpush1.bf16.msra.mxu0 0
        %244 = vmatprep.subr.bf16.mxu0 0
        %245 = vmatpush1.bf16.msra.mxu0 0
        %246 = vmatprep.subr.bf16.mxu0 0
        %247 = vmatpush1.bf16.msra.mxu0 0
        %248 = vmatprep.subr.bf16.mxu0 0
        %249 = vmatpush1.bf16.msra.mxu0 0
        %250 = vmatprep.subr.bf16.mxu0 0
        %251 = vmatpush1.bf16.msra.mxu0 0
        %252 = vmatprep.subr.bf16.mxu0 0
        %253 = vmatpush1.bf16.msra.mxu0 0
        %254 = vmatprep.subr.bf16.mxu0 0
        %255 = vmatpush1.bf16.msra.mxu0 0
        %256 = vmatprep.subr.bf16.mxu0 0
        %257 = vmatpush1.bf16.msra.mxu0 0
        %258 = vmatprep.subr.bf16.mxu0 0
        %259 = vmatpush1.bf16.msra.mxu0 0
        %260 = vmatprep.subr.bf16.mxu0 0
        %261 = vmatpush1.bf16.msra.mxu0 0
        %262 = vmatprep.subr.bf16.mxu0 0
        %263 = vmatpush1.bf16.msra.mxu0 0
        %264 = vmatprep.subr.bf16.mxu0 0
        %265 = vmatpush1.bf16.msra.mxu0 0
        %266 = vmatprep.mubr.bf16.mxu0 0
        %267 = vmatmul.mubr.bf16.gmra.mrb[0].mxu0 %v232
        %v268 = vpop.f32.mrb[0].mxu0
        %v269 = vadd.f32 0.0, %v268
        %v270 = vpop.f32.mrb[0].mxu0
        %v271 = vpop.f32.mrb[0].mxu0
        %v272 = vpop.f32.mrb[0].mxu0
        %273 = vdwg.mxu0
        %v274 = vsel %vm230, %v269, 0.0
        %275 = vadd.xlane.f32.xlu0 %v274
        %v276 = vpop.xlane.xlu0 %275
        %v277 = vmul.f32 %v276, 0.015625
        %v278 = vmul.f32 %v269, %v269
        %v279 = vsel %vm230, %v278, 0.0
        %280 = vadd.xlane.f32.xlu0 %v279
        %v281 = vpop.xlane.xlu0 %280
        %v282 = vmul.f32 %v281, 0.015625
        %v283 = vmul.f32 %v277, %v277
        %v284 = vsub.f32 %v282, %v283
        %v285 = vsub.f32 %v269, %v277
        %v286 = vadd.f32 %v284, 1e-05
        %v287 = vrsqrt.pop %v286
        %v288 = vmul.f32 %v285, %v287
        %vm289 = vcmp.ge.f32.partialorder %v288, 0.0
        %v290 = vmul.f32 %v288, 0.2
        %v291 = vsel %vm289, %v288, %v290
        %v292 = vpack.c.bf16 %v291, %v291
        %vm293 = vcmask 519168
        %294 = vst.msk [vmem:[%s195] sm:$0xf] %vm293, %v292
        %s295 = sand.u32 %s94, 1
        %s296 = scalar_lea.sflag [#allocation4], %s295
        %s297 = sand.u32 %s94, 1
        %s298 = smul.addr %s297, 4
        %s299 = scalar_lea.vmem [#allocation7], %s298
        // Predicated region
        $region37: #{tpu_custom_call.1} parent=27 // pred_check
          %p300 = pneg %p104
        $region38: #{tpu_custom_call.1} parent=27 // pred_check_branch
          %302 = sbr.rel (%p300) target = $region40
        $region39: #{tpu_custom_call.1} parent=27 // pred_region
          %s304 = ssub.s32 64, 64
          %305 = vsyncadd %s296, %s304
          %s306 = sadd.s32 %s25, %s24
          %s307 = smul.addr %s306, 64
          %s308 = scalar_lea.hbm %s2, %s307
          %s310 = sshll.u32 %s299, 4
          %s311 = int_to_ptr.vmem [resolvable:$true] %s310
          %313 = dma.vmem_to_hbm [thread:$0]  %s311, 64, %s308, %s296
        $region40: #{tpu_custom_call.1} parent=27 // pred_fallthru
          _
      $region28: #{tpu_custom_call.1} parent=5 // pred_fallthru
        _
      %p314 = scmp.le.s32.totalorder 2, %s15
      // Predicated region
      $region41: #{tpu_custom_call.1} parent=5 // pred_check
        %p315 = pneg %p314
      $region42: #{tpu_custom_call.1} parent=5 // pred_check_branch
        %317 = sbr.rel (%p315) target = $region44
      $region43: #{tpu_custom_call.1} parent=5 // pred_region
        %s318 = ssub.s32 %s15, 2
        // Predicated region
        $region45: #{tpu_custom_call.1} parent=43 // pred_check
          %p319 = pneg %p110
        $region46: #{tpu_custom_call.1} parent=43 // pred_check_branch
          %321 = sbr.rel (%p319) target = $region48
        $region47: #{tpu_custom_call.1} parent=43 // pred_region
          %s322 = sand.u32 %s95, 1
          %s323 = scalar_lea.sflag [#allocation4], %s322
          %s324 = sand.u32 %s95, 1
          %s325 = smul.addr %s324, 4
          %s326 = scalar_lea.vmem [#allocation7], %s325
          %327 = dma.done %s323, 64
        $region48: #{tpu_custom_call.1} parent=43 // pred_fallthru
          _
      $region44: #{tpu_custom_call.1} parent=5 // pred_fallthru
        _
    $region6: #{tpu_custom_call.1} parent=1 // loop_footer
      %s19 = sadd.s32 1, %s15
    $region7: #{tpu_custom_call.1} parent=1 // loop_footer_branch
      %14 = sbr.rel target = $region3
    $region8: #{tpu_custom_call.1} parent=1 // loop_exit
      _
    %328 = vsyncpa [#allocation3], 1
    %s329 = scalar_lea.sflag [#allocation3], 1
    %330 = vsyncpa %s329, 1
    %331 = vsyncpa [#allocation6], 1
    %332 = vsyncpa [#allocation4], 1
    %s333 = scalar_lea.sflag [#allocation4], 1
    %334 = vsyncpa %s333, 1

</llo_original>
